<compile_context>
chip_gen: v6e
topology: v6e:2x2x1
jax: 0.10.0
libtpu: 0.0.40
codegen_flags: <defaults>
</compile_context>

<pallas_src>
import jax
import jax.numpy as jnp
from jax.experimental import pallas as pl
from jax.experimental.pallas import tpu as pltpu

# Older jax releases expose TPUCompilerParams; current ones CompilerParams.
_CompilerParams = getattr(pltpu, "CompilerParams", None) or getattr(
    pltpu, "TPUCompilerParams")

LANE = 128                      # hidden dim padded to a multiple of this
VMEM_LIMIT = 48 * 1024 * 1024   # ~25% headroom under v7x's 64 MiB
_GATE_PERM = (0, 1, 3, 2)       # PyTorch [i,f,g,o] -> kernel [i,f,o,g]


# ----------------------------------------------------------------------------
# small helpers
# ----------------------------------------------------------------------------
def _round_up(x, m):
    return ((x + m - 1) // m) * m


def _pick_time_chunk(t, target=32):
    tt = min(t, target)
    while t % tt:
        tt -= 1
    return tt


def _pick_row_tile(n, target=512):
    if n <= target:
        return n
    tile = target - (target % 16)
    while tile >= 16:
        if n % tile == 0:
            return tile
        tile -= 16
    return n


def _use_split_directions():
    """v7x has 2 TensorCores per chip: keep the direction axis as a separate
    'parallel' grid dim there.  Single-TC chips (v5e/v6e): fuse directions."""
    try:
        kind = jax.devices()[0].device_kind.lower()
    except Exception:
        return False
    return "v7" in kind


def _compiler_params(dimension_semantics):
    return _CompilerParams(dimension_semantics=dimension_semantics,
                           vmem_limit_bytes=VMEM_LIMIT)


# ----------------------------------------------------------------------------
# Kernel 1: hoisted input projection (both directions), M = T*B tiled.
#   gates_x[d] = sum_p x_part[p] @ w_ihT[d, p] + b[d]
# ----------------------------------------------------------------------------
def _make_proj_kernel(part_is_3d):
    n_parts = len(part_is_3d)

    def kernel(*refs):
        x_refs = refs[:n_parts]
        w_ref, b_ref, out_ref = refs[n_parts:n_parts + 3]

        def read(i):
            return x_refs[i][0] if part_is_3d[i] else x_refs[i][...]

        acc = jnp.dot(read(0), w_ref[0, 0], preferred_element_type=jnp.float32)
        for p in range(1, n_parts):
            acc = acc + jnp.dot(read(p), w_ref[0, p],
                                preferred_element_type=jnp.float32)
        out_ref[0] = (acc + b_ref[0]).astype(out_ref.dtype)

    return kernel


def run_input_projection(parts, w_ihT, b, *, row_tile_target=512):
    """parts: list of (array, lead). `array` is (N, Dp) bf16 when lead is None,
    or (2, N, Dp) bf16 with `lead` selecting the direction to read.
    w_ihT: (2, P, Dp, 4Hp) bf16; b: (2, 1, 4Hp) f32.  Returns (2, N, 4Hp) bf16."""
    num_parts = len(parts)
    n = parts[0][0].shape[-2]
    dp = parts[0][0].shape[-1]
    g = w_ihT.shape[-1]
    tm = _pick_row_tile(n, row_tile_target)
    n_m = n // tm

    in_specs = []
    part_is_3d = []
    arrays = []
    for arr, lead in parts:
        if lead is None:
            in_specs.append(pl.BlockSpec((tm, dp), lambda d, m: (m, 0)))
            part_is_3d.append(False)
        else:
            in_specs.append(pl.BlockSpec(
                (1, tm, dp), lambda d, m, lead=lead: (lead, m, 0)))
            part_is_3d.append(True)
        arrays.append(arr)
    # Weight / bias index maps are constant across the inner (row) axis, so
    # they are not re-DMA'd per row tile.  (pl.Buffered(1) would further trim
    # their VMEM residency on v7x; left as a follow-up knob.)
    in_specs.append(pl.BlockSpec((1, num_parts, dp, g), lambda d, m: (d, 0, 0, 0)))
    in_specs.append(pl.BlockSpec((1, 1, g), lambda d, m: (d, 0, 0)))

    return pl.pallas_call(
        _make_proj_kernel(tuple(part_is_3d)),
        out_shape=jax.ShapeDtypeStruct((2, n, g), jnp.bfloat16),
        grid_spec=pltpu.PrefetchScalarGridSpec(
            num_scalar_prefetch=0,
            grid=(2, n_m),                       # direction outer, rows inner
            in_specs=in_specs,
            out_specs=pl.BlockSpec((1, tm, g), lambda d, m: (d, m, 0)),
        ),
        compiler_params=_compiler_params(("parallel", "parallel")),
    )(*arrays, w_ihT, b)


# ----------------------------------------------------------------------------
# Shared LSTM cell math.  Gate order [i, f, o, g], each hp lanes wide, so the
# sigmoid covers one contiguous 3*hp slab (one EUP call for i,f,o).
# All elementwise math in f32 (v5e has no bf16 VPU/EUP).
# ----------------------------------------------------------------------------
def _lstm_cell(gates, c_prev, hp):
    ifo = jax.nn.sigmoid(gates[..., 0:3 * hp])
    i = ifo[..., 0:hp]
    f = ifo[..., hp:2 * hp]
    o = ifo[..., 2 * hp:3 * hp]
    g = jnp.tanh(gates[..., 3 * hp:4 * hp])
    c_new = f * c_prev + i * g
    h_new = o * jnp.tanh(c_new)
    return h_new, c_new


# ----------------------------------------------------------------------------
# Kernel 2a: recurrence, split-direction variant (v7x: 2 TensorCores).
# grid = (2 directions [parallel], T // TT [arbitrary]).  Time indices are
# fully static: one pl.when branch per direction, Python-unrolled steps.
# ----------------------------------------------------------------------------
def _make_split_kernel(tt, hp, n_chunks, last_only):
    def kernel(gx_ref, whh_ref, out_ref, h_scr, c_scr):
        d = pl.program_id(0)
        ci = pl.program_id(1)

        @pl.when(ci == 0)
        def _():
            h_scr[...] = jnp.zeros_like(h_scr)
            c_scr[...] = jnp.zeros_like(c_scr)

        whh = whh_ref[0]                                  # (Hp, 4Hp) bf16

        def sweep(forward):
            order = range(tt) if forward else range(tt - 1, -1, -1)
            for step_n, lt in enumerate(order):           # lt is a Python int
                gates = gx_ref[0, lt].astype(jnp.float32) + jnp.dot(
                    h_scr[...].astype(jnp.bfloat16), whh,
                    preferred_element_type=jnp.float32)
                h_new, c_new = _lstm_cell(gates, c_scr[...], hp)
                h_scr[...] = h_new
                c_scr[...] = c_new
                if last_only:
                    # fwd: t = T-1 is the last chunk's last processed step.
                    # bwd: t = T-1 is chunk 0's first processed step.
                    emit = (step_n == tt - 1) if forward else (step_n == 0)
                    if emit:
                        want = (ci == n_chunks - 1) if forward else (ci == 0)

                        @pl.when(want)
                        def _():
                            out_ref[0] = h_new.astype(out_ref.dtype)
                else:
                    out_ref[0, lt] = h_new.astype(out_ref.dtype)

        @pl.when(d == 0)
        def _():
            sweep(True)

        @pl.when(d == 1)
        def _():
            sweep(False)

    return kernel


def run_recurrence_split(gx, w_hhT, *, last_only, time_chunk_target=32):
    """gx: (2, T, B, 4Hp) bf16; w_hhT: (2, Hp, 4Hp) bf16.
    Returns (2, T, B, Hp) bf16, or (2, B, Hp) bf16 when last_only."""
    _, t, b, g = gx.shape
    hp = w_hhT.shape[1]
    tt = _pick_time_chunk(t, time_chunk_target)
    n_chunks = t // tt

    def t_idx(d, c):                  # fwd walks chunks forward, bwd in reverse
        return d * (n_chunks - 1) + (1 - 2 * d) * c

    if last_only:
        out_shape = jax.ShapeDtypeStruct((2, b, hp), jnp.bfloat16)
        out_spec = pl.BlockSpec((1, b, hp), lambda d, c: (d, 0, 0))
    else:
        out_shape = jax.ShapeDtypeStruct((2, t, b, hp), jnp.bfloat16)
        out_spec = pl.BlockSpec((1, tt, b, hp),
                                lambda d, c: (d, t_idx(d, c), 0, 0))

    return pl.pallas_call(
        _make_split_kernel(tt, hp, n_chunks, last_only),
        out_shape=out_shape,
        grid_spec=pltpu.PrefetchScalarGridSpec(
            num_scalar_prefetch=0,
            grid=(2, n_chunks),
            in_specs=[
                pl.BlockSpec((1, tt, b, g),
                             lambda d, c: (d, t_idx(d, c), 0, 0)),
                pl.BlockSpec((1, hp, g), lambda d, c: (d, 0, 0)),
            ],
            out_specs=out_spec,
            scratch_shapes=[pltpu.VMEM((b, hp), jnp.float32),   # h carry (f32)
                            pltpu.VMEM((b, hp), jnp.float32)],  # c carry (f32)
        ),
        compiler_params=_compiler_params(("parallel", "arbitrary")),
    )(gx, w_hhT)


# ----------------------------------------------------------------------------
# Kernel 2b: recurrence, fused-direction variant (v5e/v6e: single TC).
# grid = (T // TT,); each grid step runs TT steps of BOTH directions
# (forward over chunk c, backward over chunk nC-1-c), halving grid overhead
# and letting the two independent recurrent matmuls pipeline on the MXU.
# ----------------------------------------------------------------------------
def _make_fused_kernel(tt, hp, n_chunks, last_only):
    def kernel(gxf_ref, gxb_ref, whh_ref, outf_ref, outb_ref, h_scr, c_scr):
        ci = pl.program_id(0)

        @pl.when(ci == 0)
        def _():
            h_scr[...] = jnp.zeros_like(h_scr)
            c_scr[...] = jnp.zeros_like(c_scr)

        whh_f = whh_ref[0]
        whh_b = whh_ref[1]

        for s in range(tt):                              # static step offsets
            ltb = tt - 1 - s
            h16 = h_scr[...].astype(jnp.bfloat16)        # (2, B, Hp)
            gf = gxf_ref[0, s].astype(jnp.float32) + jnp.dot(
                h16[0], whh_f, preferred_element_type=jnp.float32)
            gb = gxb_ref[0, ltb].astype(jnp.float32) + jnp.dot(
                h16[1], whh_b, preferred_element_type=jnp.float32)
            hf, cf = _lstm_cell(gf, c_scr[0], hp)
            hb, cb = _lstm_cell(gb, c_scr[1], hp)
            h_scr[0] = hf
            h_scr[1] = hb
            c_scr[0] = cf
            c_scr[1] = cb
            if last_only:
                if s == tt - 1:
                    @pl.when(ci == n_chunks - 1)
                    def _():
                        outf_ref[...] = hf.astype(outf_ref.dtype)
                if s == 0:
                    @pl.when(ci == 0)
                    def _():
                        outb_ref[...] = hb.astype(outb_ref.dtype)
            else:
                outf_ref[s] = hf.astype(outf_ref.dtype)
                outb_ref[ltb] = hb.astype(outb_ref.dtype)

    return kernel


def run_recurrence_fused(gx, w_hhT, *, last_only, time_chunk_target=32):
    """Returns (out_fwd, out_bwd), each (T, B, Hp) bf16, or (B, Hp) when
    last_only.  `gx` is passed twice so fwd/bwd read their own time chunks."""
    _, t, b, g = gx.shape
    hp = w_hhT.shape[1]
    tt = _pick_time_chunk(t, time_chunk_target)
    n_chunks = t // tt

    if last_only:
        out_shapes = (jax.ShapeDtypeStruct((b, hp), jnp.bfloat16),
                      jax.ShapeDtypeStruct((b, hp), jnp.bfloat16))
        out_specs = (pl.BlockSpec((b, hp), lambda c: (0, 0)),
                     pl.BlockSpec((b, hp), lambda c: (0, 0)))
    else:
        out_shapes = (jax.ShapeDtypeStruct((t, b, hp), jnp.bfloat16),
                      jax.ShapeDtypeStruct((t, b, hp), jnp.bfloat16))
        out_specs = (pl.BlockSpec((tt, b, hp), lambda c: (c, 0, 0)),
                     pl.BlockSpec((tt, b, hp), lambda c: (n_chunks - 1 - c, 0, 0)))

    return pl.pallas_call(
        _make_fused_kernel(tt, hp, n_chunks, last_only),
        out_shape=out_shapes,
        grid_spec=pltpu.PrefetchScalarGridSpec(
            num_scalar_prefetch=0,
            grid=(n_chunks,),
            in_specs=[
                pl.BlockSpec((1, tt, b, g), lambda c: (0, c, 0, 0)),
                pl.BlockSpec((1, tt, b, g), lambda c: (1, n_chunks - 1 - c, 0, 0)),
                pl.BlockSpec((2, hp, g), lambda c: (0, 0, 0)),
            ],
            out_specs=out_specs,
            scratch_shapes=[pltpu.VMEM((2, b, hp), jnp.float32),  # h carry
                            pltpu.VMEM((2, b, hp), jnp.float32)],  # c carry
        ),
        compiler_params=_compiler_params(("arbitrary",)),
    )(gx, gx, w_hhT)


# ----------------------------------------------------------------------------
# Kernel 3: FC head.  fc2( fc1( relu([h_fwd | h_bwd]) ) ); dropout = identity.
# fc1 weight is pre-split per direction so no concat is materialized.
# ----------------------------------------------------------------------------
def head_kernel(hf_ref, hb_ref, w1_ref, b1_ref, w2_ref, b2_ref, out_ref):
    hf = jnp.maximum(hf_ref[...].astype(jnp.float32), 0.0)
    hb = jnp.maximum(hb_ref[...].astype(jnp.float32), 0.0)
    z = (jnp.dot(hf, w1_ref[0], preferred_element_type=jnp.float32)
         + jnp.dot(hb, w1_ref[1], preferred_element_type=jnp.float32)
         + b1_ref[...])
    out_ref[...] = (jnp.dot(z, w2_ref[...], preferred_element_type=jnp.float32)
                    + b2_ref[...])


def run_head(h_f, h_b, fc1_w, fc1_b, fc2_w, fc2_b):
    b = h_f.shape[0]
    n_out = fc2_w.shape[1]
    return pl.pallas_call(
        head_kernel,
        out_shape=jax.ShapeDtypeStruct((b, n_out), jnp.float32),
    )(h_f, h_b, fc1_w, fc1_b, fc2_w, fc2_b)


# ----------------------------------------------------------------------------
# Full model forward (Pallas path).
# ----------------------------------------------------------------------------
def reason_lstm_forward(tokens, kp):
    # Embedding lookup (data-dependent gather) stays in plain JAX.
    emb = kp["embedding"][tokens]                         # (B, T, E) f32
    # TODO(synk): nn.Dropout is identity in eval mode; not implemented as a kernel.
    x_tm = jnp.transpose(emb, (1, 0, 2)).astype(jnp.bfloat16)   # (T, B, E)
    t, b, e = x_tm.shape
    n = t * b

    split = _use_split_directions()
    num_layers = len(kp["layers"])
    parts = [(x_tm.reshape(n, e), None)]
    h_f = h_b = None

    for li, lp in enumerate(kp["layers"]):
        hp = lp["w_hhT"].shape[1]
        g = lp["w_hhT"].shape[2]
        last_only = (li == num_layers - 1)

        gx = run_input_projection(parts, lp["w_ihT"], lp["b"])   # (2, N, 4Hp) bf16
        gx = gx.reshape(2, t, b, g)

        if split:
            out = run_recurrence_split(gx, lp["w_hhT"], last_only=last_only)
            if last_only:
                h_f, h_b = out[0], out[1]                 # (B, Hp) each
            else:
                flat = out.reshape(2, n, hp)
                parts = [(flat, 0), (flat, 1)]            # no concat
        else:
            out_f, out_b = run_recurrence_fused(gx, lp["w_hhT"],
                                                last_only=last_only)
            if last_only:
                h_f, h_b = out_f, out_b
            else:
                parts = [(out_f.reshape(n, hp), None),
                         (out_b.reshape(n, hp), None)]

    return run_head(h_f, h_b, kp["fc1_w"], kp["fc1_b"],
                    kp["fc2_w"], kp["fc2_b"])


# ----------------------------------------------------------------------------
# Pure-JAX reference operating on the raw (PyTorch-layout) parameters.
# ----------------------------------------------------------------------------
def _ref_lstm_direction(x_tm, w_ih, w_hh, bias):
    hdim = w_hh.shape[1]
    bsz = x_tm.shape[1]

    def step(carry, x_t):
        h, c = carry
        gates = x_t @ w_ih.T + h @ w_hh.T + bias
        i = jax.nn.sigmoid(gates[:, 0 * hdim:1 * hdim])
        f = jax.nn.sigmoid(gates[:, 1 * hdim:2 * hdim])
        g = jnp.tanh(gates[:, 2 * hdim:3 * hdim])
        o = jax.nn.sigmoid(gates[:, 3 * hdim:4 * hdim])
        c = f * c + i * g
        h = o * jnp.tanh(c)
        return (h, c), h

    h0 = jnp.zeros((bsz, hdim), jnp.float32)
    _, hs = jax.lax.scan(step, (h0, h0), x_tm)
    return hs


def reason_lstm_reference(tokens, tp):
    emb = tp["embedding"][tokens]
    x = jnp.transpose(emb, (1, 0, 2))                     # (T, B, E)
    for dirs in tp["layers"]:
        outs = []
        for d, p in enumerate(dirs):
            xin = x if d == 0 else x[::-1]
            hs = _ref_lstm_direction(xin, p["w_ih"], p["w_hh"],
                                     p["b_ih"] + p["b_hh"])
            if d == 1:
                hs = hs[::-1]
            outs.append(hs)
        x = jnp.concatenate(outs, axis=-1)                # (T, B, 2H)
    h_last = jnp.maximum(x[-1], 0.0)
    z = h_last @ tp["fc1_w"].T + tp["fc1_b"]
    return z @ tp["fc2_w"].T + tp["fc2_b"]


# ----------------------------------------------------------------------------
# Parameter init (PyTorch layout) and packing into the kernel layout
# (gate order [i,f,o,g], hidden padded to a multiple of 128, bf16 weights).
# ----------------------------------------------------------------------------
def init_torch_params(key, vocab_size, emb_dim, hidden_dim, fc_dim, num_layers,
                      num_targets, pad_idx):
    keys = iter(jax.random.split(key, 128))

    def uni(shape, scale):
        return jax.random.uniform(next(keys), shape, jnp.float32, -scale, scale)

    emb = uni((vocab_size, emb_dim), 1.0).at[pad_idx].set(0.0)

    hdim = hidden_dim
    k = 1.0 / (hdim ** 0.5)
    layers = []
    for layer in range(num_layers):
        din = emb_dim if layer == 0 else 2 * hdim
        dirs = []
        for _ in range(2):
            dirs.append({
                "w_ih": uni((4 * hdim, din), k),
                "w_hh": uni((4 * hdim, hdim), k),
                "b_ih": uni((4 * hdim,), k),
                "b_hh": uni((4 * hdim,), k),
            })
        layers.append(dirs)

    k1 = 1.0 / ((2 * hdim) ** 0.5)
    k2 = 1.0 / (fc_dim ** 0.5)
    return {
        "embedding": emb,
        "layers": layers,
        "fc1_w": uni((fc_dim, 2 * hdim), k1),
        "fc1_b": uni((fc_dim,), k1),
        "fc2_w": uni((num_targets, fc_dim), k2),
        "fc2_b": uni((num_targets,), k2),
    }


def _pack_gate_cols(w_t, hdim, hp, dtype):
    """(Din, 4H) columns in PyTorch gate order -> (Din, 4*Hp) in kernel order
    [i,f,o,g], each gate zero-padded from H to Hp columns."""
    din = w_t.shape[0]
    out = jnp.zeros((din, 4 * hp), dtype)
    for knew, kold in enumerate(_GATE_PERM):
        out = out.at[:, knew * hp:knew * hp + hdim].set(
            w_t[:, kold * hdim:(kold + 1) * hdim].astype(dtype))
    return out


def _pad_rows(w, rows_to):
    pad = rows_to - w.shape[0]
    if pad == 0:
        return w
    return jnp.concatenate(
        [w, jnp.zeros((pad,) + w.shape[1:], w.dtype)], axis=0)


def pack_kernel_params(tp):
    hdim = tp["layers"][0][0]["w_hh"].shape[1]
    hp = _round_up(hdim, LANE)

    layers_k = []
    for li, dirs in enumerate(tp["layers"]):
        din = dirs[0]["w_ih"].shape[1]
        num_parts = 1 if li == 0 else 2
        part_in = din // num_parts
        dp = part_in if li == 0 else hp
        w_ihT, w_hhT, bias = [], [], []
        for d in range(2):
            p = dirs[d]
            parts = []
            for part in range(num_parts):
                w_part = p["w_ih"][:, part * part_in:(part + 1) * part_in]
                wt = _pack_gate_cols(w_part.T, hdim, hp, jnp.bfloat16)
                parts.append(_pad_rows(wt, dp))
            w_ihT.append(jnp.stack(parts))                      # (P, dp, 4Hp)
            whh = _pack_gate_cols(p["w_hh"].T, hdim, hp, jnp.bfloat16)
            w_hhT.append(_pad_rows(whh, hp))                    # (Hp, 4Hp)
            b_sum = (p["b_ih"] + p["b_hh"]).reshape(1, 4 * hdim)
            bias.append(_pack_gate_cols(b_sum, hdim, hp, jnp.float32))
        layers_k.append({
            "w_ihT": jnp.stack(w_ihT),                          # (2, P, dp, 4Hp) bf16
            "w_hhT": jnp.stack(w_hhT),                          # (2, Hp, 4Hp)   bf16
            "b": jnp.stack(bias),                               # (2, 1, 4Hp)    f32
        })

    fc1 = tp["fc1_w"]                                           # (F, 2H)
    fc1_parts = [_pad_rows(fc1[:, d * hdim:(d + 1) * hdim].T, hp)
                 for d in range(2)]                             # (Hp, F) each
    return {
        "embedding": tp["embedding"],
        "layers": layers_k,
        "fc1_w": jnp.stack(fc1_parts),                          # (2, Hp, F) f32
        "fc1_b": tp["fc1_b"].reshape(1, -1),
        "fc2_w": tp["fc2_w"].T,                                 # (F, O) f32
        "fc2_b": tp["fc2_b"].reshape(1, -1),
    }


# ----------------------------------------------------------------------------
if __name__ == "__main__":
    B, T = 2, 8
    vocab_size, emb_dim, hidden_dim, fc_dim = 50, 16, 32, 64
    num_layers, num_targets, pad_idx = 2, 5, 1

    key = jax.random.PRNGKey(0)
    k_params, k_tokens = jax.random.split(key)
    torch_params = init_torch_params(k_params, vocab_size, emb_dim, hidden_dim,
                                     fc_dim, num_layers, num_targets, pad_idx)
    kernel_params = pack_kernel_params(torch_params)

    tokens = jax.random.randint(k_tokens, (B, T), 0, vocab_size, dtype=jnp.int32)

    out = jax.block_until_ready(reason_lstm_forward(tokens, kernel_params))
    assert out.shape == (B, num_targets)

    ref = jax.block_until_ready(reason_lstm_reference(tokens, torch_params))
    max_err = float(jnp.max(jnp.abs(out.astype(jnp.float32) - ref)))
    # bf16 storage of gates / activations => loosened tolerance vs f32 reference.
    assert max_err < 2e-2, f"mismatch vs JAX reference: max abs err {max_err}"

    print("KERNEL_OK")
</pallas_src>

<mosaic_0001>
module attributes {stable_mosaic.version = 11 : i64} {
  func.func @kernel(%arg0: i32, %arg1: i32, %arg2: memref<16x16xbf16, #tpu.memory_space<vmem>>, %arg3: memref<1x1x16x512xbf16, #tpu.memory_space<vmem>>, %arg4: memref<1x1x512xf32, #tpu.memory_space<vmem>>, %arg5: memref<1x16x512xbf16, #tpu.memory_space<vmem>>) attributes {dimension_semantics = [#tpu.dimension_semantics<parallel>, #tpu.dimension_semantics<parallel>], iteration_bounds = array<i64: 2, 1>, scalar_prefetch = 0 : i64, scratch_operands = 0 : i64, tpu.core_type = #tpu.core_type<tc>, window_params = [{transform_indices = @transform_0, window_bounds = array<i64: 16, 16>}, {transform_indices = @transform_1, window_bounds = array<i64: 1, 1, 16, 512>}, {transform_indices = @transform_2, window_bounds = array<i64: 1, 1, 512>}, {transform_indices = @transform_3, window_bounds = array<i64: 1, 16, 512>}]} {
    %c0 = arith.constant 0 : index
    %c0_0 = arith.constant 0 : index
    %0 = vector.load %arg2[%c0, %c0_0] : memref<16x16xbf16, #tpu.memory_space<vmem>>, vector<16x16xbf16>
    %c0_1 = arith.constant 0 : index
    %c0_2 = arith.constant 0 : index
    %c0_3 = arith.constant 0 : index
    %c0_4 = arith.constant 0 : index
    %1 = vector.load %arg3[%c0_1, %c0_2, %c0_3, %c0_4] : memref<1x1x16x512xbf16, #tpu.memory_space<vmem>>, vector<1x1x16x512xbf16>
    %2 = vector.shape_cast %1 : vector<1x1x16x512xbf16> to vector<16x512xbf16>
    %cst = arith.constant dense<0.000000e+00> : vector<16x512xf32>
    %3 = tpu.matmul %0, %2, %cst {dimension_numbers = #tpu.dot_dimension_numbers<[1], [0], [0], [1], [0, 0, 1, 1], [], []>} : vector<16x16xbf16>, vector<16x512xbf16>, vector<16x512xf32> -> vector<16x512xf32>
    %c0_5 = arith.constant 0 : index
    %c0_6 = arith.constant 0 : index
    %c0_7 = arith.constant 0 : index
    %4 = vector.load %arg4[%c0_5, %c0_6, %c0_7] : memref<1x1x512xf32, #tpu.memory_space<vmem>>, vector<1x1x512xf32>
    %5 = vector.shape_cast %4 : vector<1x1x512xf32> to vector<1x512xf32>
    %6 = vector.broadcast %5 : vector<1x512xf32> to vector<16x512xf32>
    %7 = arith.addf %3, %6 : vector<16x512xf32>
    %8 = arith.truncf %7 : vector<16x512xf32> to vector<16x512xbf16>
    %c0_8 = arith.constant 0 : index
    %c0_9 = arith.constant 0 : index
    %c0_10 = arith.constant 0 : index
    %9 = vector.load %arg5[%c0_8, %c0_9, %c0_10] : memref<1x16x512xbf16, #tpu.memory_space<vmem>>, vector<1x16x512xbf16>
    %10 = vector.shape_cast %9 : vector<1x16x512xbf16> to vector<16x512xbf16>
    %11 = vector.shape_cast %8 : vector<16x512xbf16> to vector<1x16x512xbf16>
    tpu.vector_store %arg5[%c0_8, %c0_9, %c0_10], %11 {strides = array<i32>} : memref<1x16x512xbf16, #tpu.memory_space<vmem>>, vector<1x16x512xbf16>,
    return
  }
  func.func @transform_0(%arg0: i32, %arg1: i32) -> (i32, i32) {
    %c0_i32 = arith.constant 0 : i32
    %c0_i32_0 = arith.constant 0 : i32
    return %arg1, %c0_i32 : i32, i32
  }
  func.func @transform_1(%arg0: i32, %arg1: i32) -> (i32, i32, i32, i32) {
    %c0_i32 = arith.constant 0 : i32
    %c0_i32_0 = arith.constant 0 : i32
    %c0_i32_1 = arith.constant 0 : i32
    %c0_i32_2 = arith.constant 0 : i32
    return %arg0, %c0_i32, %c0_i32_0, %c0_i32_1 : i32, i32, i32, i32
  }
  func.func @transform_2(%arg0: i32, %arg1: i32) -> (i32, i32, i32) {
    %c0_i32 = arith.constant 0 : i32
    %c0_i32_0 = arith.constant 0 : i32
    %c0_i32_1 = arith.constant 0 : i32
    return %arg0, %c0_i32, %c0_i32_0 : i32, i32, i32
  }
  func.func @transform_3(%arg0: i32, %arg1: i32) -> (i32, i32, i32) {
    %c0_i32 = arith.constant 0 : i32
    %c0_i32_0 = arith.constant 0 : i32
    return %arg0, %arg1, %c0_i32 : i32, i32, i32
  }
}

</mosaic_0001>

<llo_original>
// kernel: tpu_custom_call.1
$region0: #{tpu_custom_call.1}
  #allocation0 [shape = 'u32[]', space=smem, size = 0x4, offset = 0x4, fixed_abs, tag = 'smem constant byte address 0x4 - core index']
  #allocation1 [shape = 'u32[144,128]{1,0:T(1,128)}', space=vmem, size = 0x12000, scoped, tag = 'internal scratch']
  %s0 = inlined_call_operand.hbm [shape: bf16[16,16], index: 0, kind: input, shape index: {}]
  %s1 = inlined_call_operand.hbm [shape: bf16[2,1,16,512], index: 1, kind: input, shape index: {}]
  %s2 = inlined_call_operand.hbm [shape: f32[2,1,512], index: 2, kind: input, shape index: {}]
  %s3 = inlined_call_operand.hbm [shape: bf16[2,16,512], index: 3, kind: output, shape index: {}]
  %s4 = sld [smem:[#allocation0]]
  $region57: #{tpu_custom_call.1} parent=0
    _
  %s6 = ssub.s32 1, %s4
  %s7 = scalar_select 0, %s6, %s4
  $region1: #{tpu_custom_call.1} parent=0
    #allocation2 [shape = 'u8[4096]{0}', space=vmem, size = 0x1000, scoped, tag = 'input window, operand 0, single buffered']
    #allocation3 [shape = 's32[2]{0}', space=sflag, size = 0x8, scoped, tag = 'scoped memory for tpu_custom_call.1']
    #allocation4 [shape = 's32[2]{0}', space=sflag, size = 0x8, scoped, tag = 'scoped memory for tpu_custom_call.1']
    #allocation5 [shape = 'u8[32768]{0}', space=vmem, size = 0x8000, scoped, tag = 'input window, operand 1']
    #allocation6 [shape = 's32[2]{0}', space=sflag, size = 0x8, scoped, tag = 'scoped memory for tpu_custom_call.1']
    #allocation7 [shape = 'u8[4096]{0}', space=vmem, size = 0x1000, scoped, tag = 'input window, operand 2']
    #allocation8 [shape = 'u8[32768]{0}', space=vmem, size = 0x8000, scoped, tag = 'output window, operand 0']
    %8 = vsyncpa [#allocation3], 0
    %9 = vsyncpa [#allocation6], 0
    %s10 = scalar_lea.sflag [#allocation6], 1
    %11 = vsyncpa %s10, 0
    %12 = vsyncpa [#allocation4], 0
    %s13 = scalar_lea.sflag [#allocation4], 1
    %14 = vsyncpa %s13, 0
    loop: start=0, step=1, limit=4
    $region2: #{tpu_custom_call.1} parent=1 // loop_pre_header
      _
    $region3: #{tpu_custom_call.1} parent=1 // loop_header
      %s16 = sphi 0, %s20
      %p17 = scmp.ge.s32.totalorder %s16, 4
      %s23 = sphi 0, %s35
      %s24 = sphi 0, %s31
      %s25 = sphi 0, %s23
      %s26 = sphi 0, %s24
      %s27 = sphi 0, %s25
      %s28 = sphi 0, %s26
      %s38 = sphi 0, %s40
      %s41 = sphi 0, %s38
      %s42 = sphi 0, %s41
      %s58 = sphi 0, %s42
      %s64 = sphi 0, %s66
      %s67 = sphi 0, %s64
      %s68 = sphi 0, %s67
      %s84 = sphi 0, %s68
      %s90 = sphi 0, %s92
      %s93 = sphi 0, %s90
      %s94 = sphi 0, %s93
      %s110 = sphi 0, %s94
      %s118 = sphi 0, %s120
      %s121 = sphi 0, %s118
      %s122 = sphi 0, %s121
      %s138 = sphi 0, %s122
    $region4: #{tpu_custom_call.1} parent=1 // loop_header_branch
      %19 = sbr.rel (%p17) target = $region8
    $region5: #{tpu_custom_call.1} parent=1 // loop_body
      %s21 = ssub.s32 %s16, 1
      %s22 = ssub.s32 %s16, 2
      %s29 = sadd.s32 1, %s24
      %p30 = scmp.ge.s32.totalorder %s29, 1
      %s31 = scalar_select %p30, 0, %s29
      %s32 = sadd.s32 1, %s23
      %s33 = scalar_select %p30, %s32, %s23
      %p34 = scmp.ge.s32.totalorder %s33, 2
      %s35 = scalar_select %p34, 0, %s33
      %s36 = ssub.s32 %s24, %s31
      %p37 = scmp.eq.s32.totalorder %s36, 0
      %s39 = sadd.s32 %s38, 1
      %s40 = scalar_select %p37, %s38, %s39
      %p43 = pneg %p37
      %p44 = scmp.eq.s32.totalorder %s16, 1
      %p45 = por %p43, %p44
      %p46 = scmp.ne.s32.totalorder %s38, %s41
      %p47 = scmp.eq.s32.totalorder %s16, 0
      %p48 = por %p46, %p47
      %p49 = scmp.ne.s32.totalorder %s38, %s41
      %p50 = scmp.eq.s32.totalorder %s21, 1
      %p51 = por %p49, %p50
      %p52 = scmp.ne.s32.totalorder %s41, %s42
      %p53 = scmp.eq.s32.totalorder %s21, 0
      %p54 = por %p52, %p53
      %p55 = scmp.ne.s32.totalorder %s41, %s42
      %p56 = scmp.eq.s32.totalorder %s22, 1
      %p57 = por %p55, %p56
      %p59 = scmp.ne.s32.totalorder %s42, %s58
      %p60 = scmp.eq.s32.totalorder %s22, 0
      %p61 = por %p59, %p60
      %s62 = ssub.s32 %s23, %s35
      %p63 = scmp.eq.s32.totalorder %s62, 0
      %s65 = sadd.s32 %s64, 1
      %s66 = scalar_select %p63, %s64, %s65
      %p69 = pneg %p63
      %p70 = scmp.eq.s32.totalorder %s16, 1
      %p71 = por %p69, %p70
      %p72 = scmp.ne.s32.totalorder %s64, %s67
      %p73 = scmp.eq.s32.totalorder %s16, 0
      %p74 = por %p72, %p73
      %p75 = scmp.ne.s32.totalorder %s64, %s67
      %p76 = scmp.eq.s32.totalorder %s21, 1
      %p77 = por %p75, %p76
      %p78 = scmp.ne.s32.totalorder %s67, %s68
      %p79 = scmp.eq.s32.totalorder %s21, 0
      %p80 = por %p78, %p79
      %p81 = scmp.ne.s32.totalorder %s67, %s68
      %p82 = scmp.eq.s32.totalorder %s22, 1
      %p83 = por %p81, %p82
      %p85 = scmp.ne.s32.totalorder %s68, %s84
      %p86 = scmp.eq.s32.totalorder %s22, 0
      %p87 = por %p85, %p86
      %s88 = ssub.s32 %s23, %s35
      %p89 = scmp.eq.s32.totalorder %s88, 0
      %s91 = sadd.s32 %s90, 1
      %s92 = scalar_select %p89, %s90, %s91
      %p95 = pneg %p89
      %p96 = scmp.eq.s32.totalorder %s16, 1
      %p97 = por %p95, %p96
      %p98 = scmp.ne.s32.totalorder %s90, %s93
      %p99 = scmp.eq.s32.totalorder %s16, 0
      %p100 = por %p98, %p99
      %p101 = scmp.ne.s32.totalorder %s90, %s93
      %p102 = scmp.eq.s32.totalorder %s21, 1
      %p103 = por %p101, %p102
      %p104 = scmp.ne.s32.totalorder %s93, %s94
      %p105 = scmp.eq.s32.totalorder %s21, 0
      %p106 = por %p104, %p105
      %p107 = scmp.ne.s32.totalorder %s93, %s94
      %p108 = scmp.eq.s32.totalorder %s22, 1
      %p109 = por %p107, %p108
      %p111 = scmp.ne.s32.totalorder %s94, %s110
      %p112 = scmp.eq.s32.totalorder %s22, 0
      %p113 = por %p111, %p112
      %s114 = ssub.s32 %s23, %s35
      %s115 = ssub.s32 %s24, %s31
      %s116 = sor.u32 %s114, %s115
      %p117 = scmp.eq.s32.totalorder %s116, 0
      %s119 = sadd.s32 %s118, 1
      %s120 = scalar_select %p117, %s118, %s119
      %p123 = pneg %p117
      %p124 = scmp.eq.s32.totalorder %s16, 1
      %p125 = por %p123, %p124
      %p126 = scmp.ne.s32.totalorder %s118, %s121
      %p127 = scmp.eq.s32.totalorder %s16, 0
      %p128 = por %p126, %p127
      %p129 = scmp.ne.s32.totalorder %s118, %s121
      %p130 = scmp.eq.s32.totalorder %s21, 1
      %p131 = por %p129, %p130
      %p132 = scmp.ne.s32.totalorder %s121, %s122
      %p133 = scmp.eq.s32.totalorder %s21, 0
      %p134 = por %p132, %p133
      %p135 = scmp.ne.s32.totalorder %s121, %s122
      %p136 = scmp.eq.s32.totalorder %s22, 1
      %p137 = por %p135, %p136
      %p139 = scmp.ne.s32.totalorder %s122, %s138
      %p140 = scmp.eq.s32.totalorder %s22, 0
      %p141 = por %p139, %p140
      %p142 = scmp.le.s32.totalorder 1, %s16
      %p143 = scmp.lt.s32.totalorder %s16, 3
      %p144 = pnand %p142, %p143
      %p145 = pneg %p144
      // Predicated region
      $region9: #{tpu_custom_call.1} parent=5 // pred_check
        _
      $region10: #{tpu_custom_call.1} parent=5 // pred_check_branch
        %147 = sbr.rel (%p144) target = $region12
      $region11: #{tpu_custom_call.1} parent=5 // pred_region
        %s148 = ssub.s32 %s16, 1
        // Predicated region
        $region13: #{tpu_custom_call.1} parent=11 // pred_check
          %p149 = pneg %p54
        $region14: #{tpu_custom_call.1} parent=11 // pred_check_branch
          %151 = sbr.rel (%p149) target = $region16
        $region15: #{tpu_custom_call.1} parent=11 // pred_region
          %s152 = smul.u32 2, %s26
          %s154 = ssub.s32 128, 128
          %155 = vsyncadd [#allocation3], %s154
          %s156 = smul.addr %s152, 64
          %s157 = scalar_lea.hbm %s0, %s156
          %s158 = sshll.u32 [#allocation2], 4
          %s159 = int_to_ptr.vmem [resolvable:$true] %s158
          %164 = dma.hbm_to_vmem [thread:$0]  %s157, 128, %s159, [#allocation3], 64, 64, 4
        $region16: #{tpu_custom_call.1} parent=11 // pred_fallthru
          _
      $region12: #{tpu_custom_call.1} parent=5 // pred_fallthru
        _
      %p165 = scmp.lt.s32.totalorder %s16, 2
      // Predicated region
      $region17: #{tpu_custom_call.1} parent=5 // pred_check
        %p166 = pneg %p165
      $region18: #{tpu_custom_call.1} parent=5 // pred_check_branch
        %168 = sbr.rel (%p166) target = $region20
      $region19: #{tpu_custom_call.1} parent=5 // pred_region
        // Predicated region
        $region21: #{tpu_custom_call.1} parent=19 // pred_check
          %p169 = pneg %p74
        $region22: #{tpu_custom_call.1} parent=19 // pred_check_branch
          %171 = sbr.rel (%p169) target = $region24
        $region23: #{tpu_custom_call.1} parent=19 // pred_region
          %s172 = sand.u32 %s16, 1
          %s173 = scalar_lea.sflag [#allocation6], %s172
          %s174 = sand.u32 %s64, 1
          %s175 = smul.addr %s174, 32
          %s176 = scalar_lea.vmem [#allocation5], %s175
          %s178 = ssub.s32 512, 512
          %179 = vsyncadd %s173, %s178
          %s180 = smul.addr %s23, 8
          %s181 = smul.addr %s180, 64
          %s182 = scalar_lea.hbm %s1, %s181
          %s183 = sshll.u32 %s176, 4
          %s184 = int_to_ptr.vmem [resolvable:$true] %s183
          %189 = dma.hbm_to_vmem [thread:$0]  %s182, 512, %s184, %s173, 256, 256, 16
        $region24: #{tpu_custom_call.1} parent=19 // pred_fallthru
          _
        // Predicated region
        $region25: #{tpu_custom_call.1} parent=19 // pred_check
          %p190 = pneg %p100
        $region26: #{tpu_custom_call.1} parent=19 // pred_check_branch
          %192 = sbr.rel (%p190) target = $region28
        $region27: #{tpu_custom_call.1} parent=19 // pred_region
          %s193 = sand.u32 %s16, 1
          %s194 = scalar_lea.sflag [#allocation6], %s193
          %s195 = sand.u32 %s90, 1
          %s196 = smul.addr %s195, 4
          %s197 = scalar_lea.vmem [#allocation7], %s196
          %s199 = ssub.s32 64, 64
          %200 = vsyncadd %s194, %s199
          %s201 = smul.addr %s23, 4
          %s202 = smul.addr %s201, 16
          %s203 = scalar_lea.hbm %s2, %s202
          %s205 = sshll.u32 %s197, 4
          %s206 = int_to_ptr.vmem [resolvable:$true] %s205
          %208 = dma.hbm_to_vmem [thread:$0]  %s203, 64, %s206, %s194
        $region28: #{tpu_custom_call.1} parent=19 // pred_fallthru
          _
      $region20: #{tpu_custom_call.1} parent=5 // pred_fallthru
        _
      %p209 = scmp.le.s32.totalorder 1, %s16
      %p210 = scmp.lt.s32.totalorder %s16, 3
      %p211 = pnand %p209, %p210
      %p212 = pneg %p211
      // Predicated region
      $region29: #{tpu_custom_call.1} parent=5 // pred_check
        _
      $region30: #{tpu_custom_call.1} parent=5 // pred_check_branch
        %214 = sbr.rel (%p211) target = $region32
      $region31: #{tpu_custom_call.1} parent=5 // pred_region
        %s215 = ssub.s32 %s16, 1
        // Predicated region
        $region33: #{tpu_custom_call.1} parent=31 // pred_check
          %p216 = pneg %p54
        $region34: #{tpu_custom_call.1} parent=31 // pred_check_branch
          %218 = sbr.rel (%p216) target = $region36
        $region35: #{tpu_custom_call.1} parent=31 // pred_region
          %219 = dma.done [#allocation3], 128
        $region36: #{tpu_custom_call.1} parent=31 // pred_fallthru
          _
        %s220 = sand.u32 %s21, 1
        %s221 = scalar_lea.sflag [#allocation6], %s220
        %s222 = sand.u32 %s67, 1
        %s223 = smul.addr %s222, 32
        %s224 = scalar_lea.vmem [#allocation5], %s223
        // Predicated region
        $region37: #{tpu_custom_call.1} parent=31 // pred_check
          %p225 = pneg %p80
        $region38: #{tpu_custom_call.1} parent=31 // pred_check_branch
          %227 = sbr.rel (%p225) target = $region40
        $region39: #{tpu_custom_call.1} parent=31 // pred_region
          %228 = dma.done %s221, 512
        $region40: #{tpu_custom_call.1} parent=31 // pred_fallthru
          _
        %s229 = sand.u32 %s21, 1
        %s230 = scalar_lea.sflag [#allocation6], %s229
        %s231 = sand.u32 %s93, 1
        %s232 = smul.addr %s231, 4
        %s233 = scalar_lea.vmem [#allocation7], %s232
        // Predicated region
        $region41: #{tpu_custom_call.1} parent=31 // pred_check
          %p234 = pneg %p106
        $region42: #{tpu_custom_call.1} parent=31 // pred_check_branch
          %236 = sbr.rel (%p234) target = $region44
        $region43: #{tpu_custom_call.1} parent=31 // pred_region
          %237 = dma.done %s230, 64
        $region44: #{tpu_custom_call.1} parent=31 // pred_fallthru
          _
        %p238 = pneg %p54
        %p239 = pneg %p51
        %s240 = sand.u32 %s21, 1
        %s241 = scalar_lea.sflag [#allocation6], %s240
        %s242 = sand.u32 %s67, 1
        %s243 = smul.addr %s242, 32
        %s244 = scalar_lea.vmem [#allocation5], %s243
        %p245 = pneg %p80
        %p246 = pneg %p77
        %s247 = sand.u32 %s21, 1
        %s248 = scalar_lea.sflag [#allocation6], %s247
        %s249 = sand.u32 %s93, 1
        %s250 = smul.addr %s249, 4
        %s251 = scalar_lea.vmem [#allocation7], %s250
        %p252 = pneg %p106
        %p253 = pneg %p103
        %p254 = pneg %p134
        %p255 = pneg %p131
        %s256 = sand.u32 %s121, 1
        %s257 = scalar_lea.sflag [#allocation4], %s256
        %s258 = sand.u32 %s121, 1
        %s259 = smul.addr %s258, 32
        %s260 = scalar_lea.vmem [#allocation8], %s259
        %s261 = smul.u32 2, %s26
        %s262 = smul.u32 2, %s26
        %v264 = vld [vmem:[#allocation2] sm:$0xf]
        %v265 = vld [vmem:[#allocation2 + $0x4] sm:$0xf]
        %v266 = vld [vmem:[%s224] sm:$0xff]
        %v267 = vld [vmem:[%s224 + $0x8] sm:$0xff]
        %v268 = vld [vmem:[%s224 + $0x10] sm:$0xff]
        %v269 = vld [vmem:[%s224 + $0x18] sm:$0xff]
        %v270 = vld [vmem:[%s233] sm:$0xf]
        %v272 = vlaneseq
        %v273 = vshrl.u32 %v272, 7
        %v274 = vsub.s32 0, %v273
        %v275 = vrot.slane %v270, %v274
        %v276 = vlaneseq
        %v277 = vshrl.u32 %v276, 7
        %v278 = vsub.s32 1, %v277
        %v279 = vrot.slane %v270, %v278
        %v280 = vlaneseq
        %v281 = vshrl.u32 %v280, 7
        %v282 = vsub.s32 2, %v281
        %v283 = vrot.slane %v270, %v282
        %v284 = vlaneseq
        %v285 = vshrl.u32 %v284, 7
        %v286 = vsub.s32 3, %v285
        %v287 = vrot.slane %v270, %v286
        %v294 = vunpack.c.l.b16 %v264
        %v295 = vunpack.c.l.b16 %v265
        %v296 = vpack.c.b16 %v295, %v294
        %v301 = vunpack.c.l.b16 %v266
        %v302 = vunpack.c.h.b16 %v266
        %v303 = vunpack.c.l.b16 %v267
        %v304 = vunpack.c.h.b16 %v267
        %v305 = vunpack.c.l.b16 %v268
        %v306 = vunpack.c.h.b16 %v268
        %v307 = vunpack.c.l.b16 %v269
        %v308 = vunpack.c.h.b16 %v269
        %v309 = vpack.c.b16 %v305, %v301
        %v310 = vpack.c.b16 %v306, %v302
        %v311 = vpack.c.b16 %v307, %v303
        %v312 = vpack.c.b16 %v308, %v304
        %vm317 = vcmask 130048
        %v319 = vsel %vm317, %v296, 0
        %321 = vmatprep.subr.bf16.mxu0 0
        %322 = vmatpush1.bf16.msra.mxu0 0
        %323 = vmatprep.subr.bf16.mxu0 0
        %324 = vmatpush1.bf16.msra.mxu0 0
        %325 = vmatprep.subr.bf16.mxu0 0
        %326 = vmatpush1.bf16.msra.mxu0 0
        %327 = vmatprep.subr.bf16.mxu0 0
        %328 = vmatpush1.bf16.msra.mxu0 0
        %329 = vmatprep.subr.bf16.mxu0 0
        %330 = vmatpush1.bf16.msra.mxu0 0
        %331 = vmatprep.subr.bf16.mxu0 0
        %332 = vmatpush1.bf16.msra.mxu0 0
        %333 = vmatprep.subr.bf16.mxu0 0
        %334 = vmatpush1.bf16.msra.mxu0 0
        %335 = vmatprep.subr.bf16.mxu0 %v310
        %336 = vmatpush1.bf16.msra.mxu0 %v309
        %337 = vmatprep.subr.bf16.mxu0 0
        %338 = vmatpush2.bf16.msra.mxu0 0
        %339 = vmatprep.subr.bf16.mxu0 0
        %340 = vmatpush2.bf16.msra.mxu0 0
        %341 = vmatprep.subr.bf16.mxu0 0
        %342 = vmatpush2.bf16.msra.mxu0 0
        %343 = vmatprep.subr.bf16.mxu0 0
        %344 = vmatpush2.bf16.msra.mxu0 0
        %345 = vmatprep.subr.bf16.mxu0 0
        %346 = vmatpush2.bf16.msra.mxu0 0
        %347 = vmatprep.subr.bf16.mxu0 0
        %348 = vmatpush2.bf16.msra.mxu0 0
        %349 = vmatprep.subr.bf16.mxu0 0
        %350 = vmatpush2.bf16.msra.mxu0 0
        %351 = vmatprep.subr.bf16.mxu0 0
        %352 = vmatpush2.bf16.msra.mxu0 0
        %353 = vmatprep.mubr.bf16.mxu0 0
        %354 = vmatmul.mubr.bf16.gmra.mxu0 %v319
        %v355 = vpop.f32.mrf.mxu0
        %v356 = vadd.f32 %v275, %v355
        %v357 = vpop.f32.mrf.mxu0
        %v358 = vadd.f32 %v279, %v357
        %v359 = vpop.f32.mrf.mxu0
        %v360 = vadd.f32 %v275, %v359
        %v361 = vpop.f32.mrf.mxu0
        %v362 = vadd.f32 %v279, %v361
        %363 = vdwg.mxu0
        %364 = vmatprep.subr.bf16.mxu0 0
        %365 = vmatpush1.bf16.msra.mxu0 0
        %366 = vmatprep.subr.bf16.mxu0 0
        %367 = vmatpush1.bf16.msra.mxu0 0
        %368 = vmatprep.subr.bf16.mxu0 0
        %369 = vmatpush1.bf16.msra.mxu0 0
        %370 = vmatprep.subr.bf16.mxu0 0
        %371 = vmatpush1.bf16.msra.mxu0 0
        %372 = vmatprep.subr.bf16.mxu0 0
        %373 = vmatpush1.bf16.msra.mxu0 0
        %374 = vmatprep.subr.bf16.mxu0 0
        %375 = vmatpush1.bf16.msra.mxu0 0
        %376 = vmatprep.subr.bf16.mxu0 0
        %377 = vmatpush1.bf16.msra.mxu0 0
        %378 = vmatprep.subr.bf16.mxu0 %v312
        %379 = vmatpush1.bf16.msra.mxu0 %v311
        %380 = vmatprep.subr.bf16.mxu0 0
        %381 = vmatpush2.bf16.msra.mxu0 0
        %382 = vmatprep.subr.bf16.mxu0 0
        %383 = vmatpush2.bf16.msra.mxu0 0
        %384 = vmatprep.subr.bf16.mxu0 0
        %385 = vmatpush2.bf16.msra.mxu0 0
        %386 = vmatprep.subr.bf16.mxu0 0
        %387 = vmatpush2.bf16.msra.mxu0 0
        %388 = vmatprep.subr.bf16.mxu0 0
        %389 = vmatpush2.bf16.msra.mxu0 0
        %390 = vmatprep.subr.bf16.mxu0 0
        %391 = vmatpush2.bf16.msra.mxu0 0
        %392 = vmatprep.subr.bf16.mxu0 0
        %393 = vmatpush2.bf16.msra.mxu0 0
        %394 = vmatprep.subr.bf16.mxu0 0
        %395 = vmatpush2.bf16.msra.mxu0 0
        %396 = vmatprep.mubr.bf16.mxu0 0
        %397 = vmatmul.mubr.bf16.gmra.mxu0 %v319
        %v398 = vpop.f32.mrf.mxu0
        %v399 = vadd.f32 %v283, %v398
        %v400 = vpop.f32.mrf.mxu0
        %v401 = vadd.f32 %v287, %v400
        %v402 = vpop.f32.mrf.mxu0
        %v403 = vadd.f32 %v283, %v402
        %v404 = vpop.f32.mrf.mxu0
        %v405 = vadd.f32 %v287, %v404
        %406 = vdwg.mxu0
        %v407 = vpack.c.bf16 %v360, %v356
        %v408 = vpack.c.bf16 %v362, %v358
        %v409 = vpack.c.bf16 %v403, %v399
        %v410 = vpack.c.bf16 %v405, %v401
        %v415 = vunpack.c.l.b16 %v407
        %v416 = vunpack.c.l.b16 %v408
        %v417 = vunpack.c.l.b16 %v409
        %v418 = vunpack.c.l.b16 %v410
        %v419 = vunpack.c.h.b16 %v407
        %v420 = vunpack.c.h.b16 %v408
        %v421 = vunpack.c.h.b16 %v409
        %v422 = vunpack.c.h.b16 %v410
        %v423 = vpack.c.b16 %v416, %v415
        %v424 = vpack.c.b16 %v418, %v417
        %v425 = vpack.c.b16 %v420, %v419
        %v426 = vpack.c.b16 %v422, %v421
        %431 = vst [vmem:[%s260] sm:$0xff] %v423
        %432 = vst [vmem:[%s260 + $0x8] sm:$0xff] %v424
        %433 = vst [vmem:[%s260 + $0x10] sm:$0xff] %v425
        %434 = vst [vmem:[%s260 + $0x18] sm:$0xff] %v426
        %s435 = sand.u32 %s121, 1
        %s436 = scalar_lea.sflag [#allocation4], %s435
        %s437 = sand.u32 %s121, 1
        %s438 = smul.addr %s437, 32
        %s439 = scalar_lea.vmem [#allocation8], %s438
        // Predicated region
        $region45: #{tpu_custom_call.1} parent=31 // pred_check
          %p440 = pneg %p131
        $region46: #{tpu_custom_call.1} parent=31 // pred_check_branch
          %442 = sbr.rel (%p440) target = $region48
        $region47: #{tpu_custom_call.1} parent=31 // pred_region
          %s443 = smul.u32 2, %s26
          %s445 = ssub.s32 512, 512
          %446 = vsyncadd %s436, %s445
          %s447 = smul.addr %s443, 4
          %s448 = smul.addr %s25, 8
          %s449 = sadd.s32 %s447, %s448
          %s450 = smul.addr %s449, 64
          %s451 = scalar_lea.hbm %s3, %s450
          %s452 = sshll.u32 %s439, 4
          %s453 = int_to_ptr.vmem [resolvable:$true] %s452
          %458 = dma.vmem_to_hbm [thread:$0]  %s453, 512, %s451, %s436, 256, 256, 16
        $region48: #{tpu_custom_call.1} parent=31 // pred_fallthru
          _
      $region32: #{tpu_custom_call.1} parent=5 // pred_fallthru
        _
      %p459 = scmp.le.s32.totalorder 2, %s16
      // Predicated region
      $region49: #{tpu_custom_call.1} parent=5 // pred_check
        %p460 = pneg %p459
      $region50: #{tpu_custom_call.1} parent=5 // pred_check_branch
        %462 = sbr.rel (%p460) target = $region52
      $region51: #{tpu_custom_call.1} parent=5 // pred_region
        %s463 = ssub.s32 %s16, 2
        // Predicated region
        $region53: #{tpu_custom_call.1} parent=51 // pred_check
          %p464 = pneg %p137
        $region54: #{tpu_custom_call.1} parent=51 // pred_check_branch
          %466 = sbr.rel (%p464) target = $region56
        $region55: #{tpu_custom_call.1} parent=51 // pred_region
          %s467 = sand.u32 %s122, 1
          %s468 = scalar_lea.sflag [#allocation4], %s467
          %s469 = sand.u32 %s122, 1
          %s470 = smul.addr %s469, 32
          %s471 = scalar_lea.vmem [#allocation8], %s470
          %472 = dma.done %s468, 512
        $region56: #{tpu_custom_call.1} parent=51 // pred_fallthru
          _
      $region52: #{tpu_custom_call.1} parent=5 // pred_fallthru
        _
    $region6: #{tpu_custom_call.1} parent=1 // loop_footer
      %s20 = sadd.s32 1, %s16
    $region7: #{tpu_custom_call.1} parent=1 // loop_footer_branch
      %15 = sbr.rel target = $region3
    $region8: #{tpu_custom_call.1} parent=1 // loop_exit
      _
    %473 = vsyncpa [#allocation3], 1
    %s474 = scalar_lea.sflag [#allocation3], 1
    %475 = vsyncpa %s474, 1
    %476 = vsyncpa [#allocation6], 1
    %s477 = scalar_lea.sflag [#allocation6], 1
    %478 = vsyncpa %s477, 1
    %479 = vsyncpa [#allocation4], 1
    %s480 = scalar_lea.sflag [#allocation4], 1
    %481 = vsyncpa %s480, 1

</llo_original>
